<compile_context>
chip_gen: v5e
topology: v5e:2x2
jax: 0.10.0
libtpu: 0.0.40
codegen_flags: <defaults>
</compile_context>

<pallas_src>
import jax
import jax.numpy as jnp
import numpy as np
from jax.experimental import pallas as pl
from jax.experimental.pallas import tpu as pltpu

Z_DIM = 1          # forced by combine_z[:, 0:1] in the reference forward
T_DIM = 32         # transition_dim (hidden)
PACK = 4 * T_DIM   # 128 packed hidden lanes

# (name, fan_in, fan_out) for every Linear used in forward().
_LINEARS = [
    ("gate_z_to_hidden",          Z_DIM, T_DIM),
    ("gate_b_to_hidden",          2,     T_DIM),
    ("gate_hidden_to_all",        T_DIM, Z_DIM),
    ("proposed_mean_z_to_hidden", Z_DIM, T_DIM),
    ("proposed_mean_b_to_hidden", 2,     T_DIM),
    ("proposed_mean_hidden_to_z", T_DIM, Z_DIM),
    ("proposed_mean_hidden_to_b", T_DIM, Z_DIM),
    ("sig_z",                     Z_DIM, Z_DIM),
    ("sig_b",                     Z_DIM, Z_DIM),
]


def _gated_transition_kernel(x_ref, w1b_ref, w2_ref, tail_ref, out_ref):
    # x: [B, 3]  (col 0 = z_{t-1}, cols 1:3 = behavior)
    x = x_ref[...]
    w1b = w1b_ref[...]                                   # [4, 128]

    # Fused x -> hidden: one 128-lane matmul + packed bias row, then relu.
    # Lanes = [gate_z_hid | gate_b_hid | pm_z_hid | pm_b_hid], cross terms zeroed.
    h = jnp.dot(x, w1b[0:3, :], preferred_element_type=jnp.float32) + w1b[3:4, :]
    h = jnp.maximum(h, 0.0)                              # [B, 128]

    # Fused hidden -> scalar: block-diagonal [128, 3] matmul (0.5 gate averaging
    # folded into the weights) + packed bias row.
    # col 0 = gate pre-sigmoid, col 1 = proposed_mean_z, col 2 = proposed_mean_b
    s = jnp.dot(h, w2_ref[...], preferred_element_type=jnp.float32) + tail_ref[0:1, 0:3]

    gate = jax.nn.sigmoid(s[:, 0:1])                     # [B, 1]
    pm = s[:, 1:3]                                       # [pm_z | pm_b]

    loc = pm[:, 0:1] * (1.0 - gate) + pm[:, 1:2] * gate

    # 1x1 sig linears on the VPU: softplus(relu(pm) * w_sig + b_sig).
    sp = jax.nn.softplus(
        jnp.maximum(pm, 0.0) * tail_ref[1:2, 0:2] + tail_ref[2:3, 0:2])
    scale = sp[:, 0:1] * (1.0 - gate) + sp[:, 1:2] * gate

    out_ref[...] = jnp.concatenate([loc, scale], axis=-1)   # [B, 2], one store


def init_params(key):
    """Deterministic PyTorch-like init: U(-1/sqrt(fan_in), 1/sqrt(fan_in))."""
    params = {}
    for name, fan_in, fan_out in _LINEARS:
        key, kw, kb = jax.random.split(key, 3)
        bound = 1.0 / np.sqrt(fan_in)
        params[f"w_{name}"] = jax.random.uniform(
            kw, (fan_in, fan_out), jnp.float32, -bound, bound)
        params[f"b_{name}"] = jax.random.uniform(
            kb, (1, fan_out), jnp.float32, -bound, bound)
    return params


def pack_params(p):
    """Pack the 9 linears into 3 contiguous slabs (done once, outside the kernel)."""
    H = T_DIM

    # [4, 128]: rows 0..2 are the x->hidden weight (row 0 = z input, rows 1:3 =
    # behavior input), row 3 is the packed bias.
    w1b = jnp.zeros((4, PACK), jnp.float32)
    w1b = w1b.at[0:1, 0 * H:1 * H].set(p["w_gate_z_to_hidden"])
    w1b = w1b.at[1:3, 1 * H:2 * H].set(p["w_gate_b_to_hidden"])
    w1b = w1b.at[0:1, 2 * H:3 * H].set(p["w_proposed_mean_z_to_hidden"])
    w1b = w1b.at[1:3, 3 * H:4 * H].set(p["w_proposed_mean_b_to_hidden"])
    b1 = jnp.concatenate(
        [p["b_gate_z_to_hidden"], p["b_gate_b_to_hidden"],
         p["b_proposed_mean_z_to_hidden"], p["b_proposed_mean_b_to_hidden"]],
        axis=-1)                                                    # [1, 128]
    w1b = w1b.at[3:4, :].set(b1)

    # [128, 3] block-diagonal hidden -> scalar weight (0.5 averaging folded in).
    w2 = jnp.zeros((PACK, 3), jnp.float32)
    w2 = w2.at[0 * H:1 * H, 0:1].set(0.5 * p["w_gate_hidden_to_all"])
    w2 = w2.at[1 * H:2 * H, 0:1].set(0.5 * p["w_gate_hidden_to_all"])
    w2 = w2.at[2 * H:3 * H, 1:2].set(p["w_proposed_mean_hidden_to_z"])
    w2 = w2.at[3 * H:4 * H, 2:3].set(p["w_proposed_mean_hidden_to_b"])

    # [3, 4] tail slab:
    #   row 0 = [b_gate_hidden_to_all, b_pm_hidden_to_z, b_pm_hidden_to_b, 0]
    #   row 1 = [w_sig_z, w_sig_b, 0, 0]
    #   row 2 = [b_sig_z, b_sig_b, 0, 0]
    tail = jnp.zeros((3, 4), jnp.float32)
    tail = tail.at[0:1, 0:1].set(p["b_gate_hidden_to_all"])
    tail = tail.at[0:1, 1:2].set(p["b_proposed_mean_hidden_to_z"])
    tail = tail.at[0:1, 2:3].set(p["b_proposed_mean_hidden_to_b"])
    tail = tail.at[1:2, 0:1].set(p["w_sig_z"])
    tail = tail.at[1:2, 1:2].set(p["w_sig_b"])
    tail = tail.at[2:3, 0:1].set(p["b_sig_z"])
    tail = tail.at[2:3, 1:2].set(p["b_sig_b"])

    return w1b, w2, tail


def gated_transition_z(combine_z, packed):
    w1b, w2, tail = packed
    B = combine_z.shape[0]
    vmem = pl.BlockSpec(memory_space=pltpu.MemorySpace.VMEM)

    out = pl.pallas_call(
        _gated_transition_kernel,
        out_shape=jax.ShapeDtypeStruct((B, 2), jnp.float32),
        in_specs=[vmem] * 4,
        out_specs=vmem,
    )(combine_z, w1b, w2, tail)

    return out[:, 0:1], out[:, 1:2]


def reference(combine_z, p):
    """Pure-JAX replica of the PyTorch forward (unpacked params), for checking."""
    relu = lambda t: jnp.maximum(t, 0.0)
    lin = lambda x, w, b: x @ w + b
    z = combine_z[:, 0:1]
    beh = combine_z[:, 1:]
    _gate = (relu(lin(beh, p["w_gate_b_to_hidden"], p["b_gate_b_to_hidden"]))
             + relu(lin(z, p["w_gate_z_to_hidden"], p["b_gate_z_to_hidden"]))) * 0.5
    gate = jax.nn.sigmoid(lin(_gate, p["w_gate_hidden_to_all"], p["b_gate_hidden_to_all"]))
    pmb = lin(relu(lin(beh, p["w_proposed_mean_b_to_hidden"], p["b_proposed_mean_b_to_hidden"])),
              p["w_proposed_mean_hidden_to_b"], p["b_proposed_mean_hidden_to_b"])
    pmz = lin(relu(lin(z, p["w_proposed_mean_z_to_hidden"], p["b_proposed_mean_z_to_hidden"])),
              p["w_proposed_mean_hidden_to_z"], p["b_proposed_mean_hidden_to_z"])
    loc = pmz * (1.0 - gate) + pmb * gate
    scale = jax.nn.softplus(lin(relu(pmz), p["w_sig_z"], p["b_sig_z"])) * (1.0 - gate)
    scale = scale + jax.nn.softplus(lin(relu(pmb), p["w_sig_b"], p["b_sig_b"])) * gate
    return loc, scale


if __name__ == "__main__":
    key = jax.random.PRNGKey(0)
    k_params, k_x = jax.random.split(key)

    params = init_params(k_params)
    packed = pack_params(params)

    B = 8
    combine_z = jax.random.normal(k_x, (B, Z_DIM + 2), dtype=jnp.float32)  # [8, 3]

    loc, scale = gated_transition_z(combine_z, packed)
    jax.block_until_ready((loc, scale))

    loc_ref, scale_ref = reference(combine_z, params)
    assert loc.shape == (B, Z_DIM) and scale.shape == (B, Z_DIM)
    np.testing.assert_allclose(np.asarray(loc), np.asarray(loc_ref), atol=1e-5, rtol=1e-5)
    np.testing.assert_allclose(np.asarray(scale), np.asarray(scale_ref), atol=1e-5, rtol=1e-5)

    print("KERNEL_OK")
</pallas_src>

<mosaic_0001>
module attributes {stable_mosaic.version = 11 : i64} {
  func.func @_gated_transition_kernel(%arg0: memref<8x3xf32, #tpu.memory_space<vmem>>, %arg1: memref<4x128xf32, #tpu.memory_space<vmem>>, %arg2: memref<128x3xf32, #tpu.memory_space<vmem>>, %arg3: memref<3x4xf32, #tpu.memory_space<vmem>>, %arg4: memref<8x2xf32, #tpu.memory_space<vmem>>) attributes {dimension_semantics = [], scalar_prefetch = 0 : i64, scratch_operands = 0 : i64, tpu.core_type = #tpu.core_type<tc>} {
    %c0 = arith.constant 0 : index
    %c0_0 = arith.constant 0 : index
    %0 = vector.load %arg0[%c0, %c0_0] : memref<8x3xf32, #tpu.memory_space<vmem>>, vector<8x3xf32>
    %c0_1 = arith.constant 0 : index
    %c0_2 = arith.constant 0 : index
    %1 = vector.load %arg1[%c0_1, %c0_2] : memref<4x128xf32, #tpu.memory_space<vmem>>, vector<4x128xf32>
    %2 = vector.extract_strided_slice %1 {offsets = [0, 0], sizes = [3, 128], strides = [1, 1]} : vector<4x128xf32> to vector<3x128xf32>
    %cst = arith.constant dense<0.000000e+00> : vector<8x128xf32>
    %3 = tpu.matmul %0, %2, %cst {dimension_numbers = #tpu.dot_dimension_numbers<[1], [0], [0], [1], [0, 0, 1, 1], [], []>} : vector<8x3xf32>, vector<3x128xf32>, vector<8x128xf32> -> vector<8x128xf32>
    %4 = vector.extract_strided_slice %1 {offsets = [3, 0], sizes = [1, 128], strides = [1, 1]} : vector<4x128xf32> to vector<1x128xf32>
    %5 = vector.broadcast %4 : vector<1x128xf32> to vector<8x128xf32>
    %6 = arith.addf %3, %5 : vector<8x128xf32>
    %cst_3 = arith.constant 0.000000e+00 : f32
    %7 = vector.broadcast %cst_3 : f32 to vector<8x128xf32>
    %8 = arith.maximumf %6, %7 : vector<8x128xf32>
    %c0_4 = arith.constant 0 : index
    %c0_5 = arith.constant 0 : index
    %9 = vector.load %arg2[%c0_4, %c0_5] : memref<128x3xf32, #tpu.memory_space<vmem>>, vector<128x3xf32>
    %cst_6 = arith.constant dense<0.000000e+00> : vector<8x3xf32>
    %10 = tpu.matmul %8, %9, %cst_6 {dimension_numbers = #tpu.dot_dimension_numbers<[1], [0], [0], [1], [0, 0, 1, 1], [], []>} : vector<8x128xf32>, vector<128x3xf32>, vector<8x3xf32> -> vector<8x3xf32>
    %c0_7 = arith.constant 0 : index
    %c0_8 = arith.constant 0 : index
    %11 = vector.load %arg3[%c0_7, %c0_8] : memref<3x4xf32, #tpu.memory_space<vmem>>, vector<1x3xf32>
    %12 = vector.broadcast %11 : vector<1x3xf32> to vector<8x3xf32>
    %13 = arith.addf %10, %12 : vector<8x3xf32>
    %14 = vector.extract_strided_slice %13 {offsets = [0, 0], sizes = [8, 1], strides = [1, 1]} : vector<8x3xf32> to vector<8x1xf32>
    %15 = arith.negf %14 : vector<8x1xf32>
    %16 = math.exp %15 : vector<8x1xf32>
    %cst_9 = arith.constant 1.000000e+00 : f32
    %17 = vector.broadcast %cst_9 : f32 to vector<8x1xf32>
    %18 = arith.addf %17, %16 : vector<8x1xf32>
    %19 = arith.divf %17, %18 : vector<8x1xf32>
    %20 = vector.extract_strided_slice %13 {offsets = [0, 1], sizes = [8, 2], strides = [1, 1]} : vector<8x3xf32> to vector<8x2xf32>
    %21 = vector.extract_strided_slice %20 {offsets = [0, 0], sizes = [8, 1], strides = [1, 1]} : vector<8x2xf32> to vector<8x1xf32>
    %cst_10 = arith.constant 1.000000e+00 : f32
    %22 = vector.broadcast %cst_10 : f32 to vector<8x1xf32>
    %23 = arith.subf %22, %19 : vector<8x1xf32>
    %24 = arith.mulf %21, %23 : vector<8x1xf32>
    %25 = vector.extract_strided_slice %20 {offsets = [0, 1], sizes = [8, 1], strides = [1, 1]} : vector<8x2xf32> to vector<8x1xf32>
    %26 = arith.mulf %25, %19 : vector<8x1xf32>
    %27 = arith.addf %24, %26 : vector<8x1xf32>
    %cst_11 = arith.constant 0.000000e+00 : f32
    %28 = vector.broadcast %cst_11 : f32 to vector<8x2xf32>
    %29 = arith.maximumf %20, %28 : vector<8x2xf32>
    %c1 = arith.constant 1 : index
    %c0_12 = arith.constant 0 : index
    %30 = vector.load %arg3[%c1, %c0_12] : memref<3x4xf32, #tpu.memory_space<vmem>>, vector<1x2xf32>
    %31 = vector.broadcast %30 : vector<1x2xf32> to vector<8x2xf32>
    %32 = arith.mulf %29, %31 : vector<8x2xf32>
    %c2 = arith.constant 2 : index
    %c0_13 = arith.constant 0 : index
    %33 = vector.load %arg3[%c2, %c0_13] : memref<3x4xf32, #tpu.memory_space<vmem>>, vector<1x2xf32>
    %34 = vector.broadcast %33 : vector<1x2xf32> to vector<8x2xf32>
    %35 = arith.addf %32, %34 : vector<8x2xf32>
    %cst_14 = arith.constant 0.000000e+00 : f32
    %36 = vector.broadcast %cst_14 : f32 to vector<8x2xf32>
    %37 = arith.maximumf %35, %36 : vector<8x2xf32>
    %38 = vector.broadcast %cst_14 : f32 to vector<8x2xf32>
    %39 = arith.subf %35, %38 : vector<8x2xf32>
    %40 = arith.cmpf one, %39, %39 : vector<8x2xf32>
    %41 = vector.broadcast %cst_14 : f32 to vector<8x2xf32>
    %42 = arith.addf %35, %41 : vector<8x2xf32>
    %43 = math.absf %39 : vector<8x2xf32>
    %cst_15 = arith.constant 0.000000e+00 : f32
    %44 = vector.broadcast %cst_15 : f32 to vector<8x2xf32>
    %45 = arith.subf %44, %43 : vector<8x2xf32>
    %46 = math.exp %45 : vector<8x2xf32>
    %47 = math.log1p %46 : vector<8x2xf32>
    %48 = arith.addf %37, %47 : vector<8x2xf32>
    %49 = arith.select %40, %42, %48 : vector<8x2xi1>, vector<8x2xf32>
    %50 = vector.extract_strided_slice %49 {offsets = [0, 0], sizes = [8, 1], strides = [1, 1]} : vector<8x2xf32> to vector<8x1xf32>
    %cst_16 = arith.constant 1.000000e+00 : f32
    %51 = vector.broadcast %cst_16 : f32 to vector<8x1xf32>
    %52 = arith.subf %51, %19 : vector<8x1xf32>
    %53 = arith.mulf %50, %52 : vector<8x1xf32>
    %54 = vector.extract_strided_slice %49 {offsets = [0, 1], sizes = [8, 1], strides = [1, 1]} : vector<8x2xf32> to vector<8x1xf32>
    %55 = arith.mulf %54, %19 : vector<8x1xf32>
    %56 = arith.addf %53, %55 : vector<8x1xf32>
    %57 = tpu.concatenate %27, %56 in 1 : vector<8x1xf32>, vector<8x1xf32> -> vector<8x2xf32>
    %c0_17 = arith.constant 0 : index
    %c0_18 = arith.constant 0 : index
    %58 = vector.load %arg4[%c0_17, %c0_18] : memref<8x2xf32, #tpu.memory_space<vmem>>, vector<8x2xf32>
    tpu.vector_store %arg4[%c0_17, %c0_18], %57 {strides = array<i32>} : memref<8x2xf32, #tpu.memory_space<vmem>>, vector<8x2xf32>,
    return
  }
}

</mosaic_0001>

<llo_original>
// kernel: tpu_custom_call.1
$region0: #{tpu_custom_call.1}
  #allocation0 [shape = 'u32[]', space=smem, size = 0x4, offset = 0x4, fixed_abs, tag = 'smem constant byte address 0x4 - core index']
  #allocation1 [shape = 'u32[72,128]{1,0:T(1,128)}', space=vmem, size = 0x9000, scoped, tag = 'internal scratch']
  %s0 = inlined_call_operand.vmem [shape: f32[8,3], index: 0, kind: input, shape index: {}]
  %s1 = inlined_call_operand.vmem [shape: f32[4,128], index: 1, kind: input, shape index: {}]
  %s2 = inlined_call_operand.vmem [shape: f32[128,3], index: 2, kind: input, shape index: {}]
  %s3 = inlined_call_operand.vmem [shape: f32[3,4], index: 3, kind: input, shape index: {}]
  %s4 = inlined_call_operand.vmem [shape: f32[8,2], index: 4, kind: output, shape index: {}]
  %s5 = sld [smem:[#allocation0]]
  $region26: #{tpu_custom_call.1} parent=0
    _
  %s7 = ssub.s32 1, %s5
  %s8 = scalar_select 0, %s7, %s5
  // Predicated region
  $region2: #{tpu_custom_call.1} parent=0 // pred_check
    _
  $region3: #{tpu_custom_call.1} parent=0 // pred_check_branch
    %10 = sbr.rel (0) target = $region5
  $region4: #{tpu_custom_call.1} parent=0 // pred_region
    _
  $region5: #{tpu_custom_call.1} parent=0 // pred_fallthru
    _
  // Predicated region
  $region6: #{tpu_custom_call.1} parent=0 // pred_check
    _
  $region7: #{tpu_custom_call.1} parent=0 // pred_check_branch
    %12 = sbr.rel (0) target = $region9
  $region8: #{tpu_custom_call.1} parent=0 // pred_region
    _
  $region9: #{tpu_custom_call.1} parent=0 // pred_fallthru
    _
  // Predicated region
  $region10: #{tpu_custom_call.1} parent=0 // pred_check
    _
  $region11: #{tpu_custom_call.1} parent=0 // pred_check_branch
    %14 = sbr.rel (0) target = $region13
  $region12: #{tpu_custom_call.1} parent=0 // pred_region
    _
  $region13: #{tpu_custom_call.1} parent=0 // pred_fallthru
    _
  // Predicated region
  $region14: #{tpu_custom_call.1} parent=0 // pred_check
    _
  $region15: #{tpu_custom_call.1} parent=0 // pred_check_branch
    %16 = sbr.rel (0) target = $region17
  $region16: #{tpu_custom_call.1} parent=0 // pred_region
    _
  $region17: #{tpu_custom_call.1} parent=0 // pred_fallthru
    _
  %v17 = vld [vmem:[%s0] sm:$0xff]
  %v18 = vld [vmem:[%s1] sm:$0xf]
  %v19 = vperm.slane %v18, 3
  %vm20 = vcmask 23552
  %v22 = vsel %vm20, %v17, 0
  %vm24 = vcmask 1042432
  %v26 = vsel %vm24, %v18, 0
  %28 = vmatpush.msra.mxu0 0.0
  %29 = vmatpush.msra.mxu0 0.0
  %30 = vmatpush.msra.mxu0 0.0
  %31 = vmatpush.msra.mxu0 0.0
  %32 = vmatpush.msra.mxu0 0.0
  %33 = vmatpush.msra.mxu0 0.0
  %34 = vmatpush.msra.mxu0 0.0
  %35 = vmatpush.msra.mxu0 0.0
  %36 = vmatpush.msra.mxu0 0.0
  %37 = vmatpush.msra.mxu0 0.0
  %38 = vmatpush.msra.mxu0 0.0
  %39 = vmatpush.msra.mxu0 0.0
  %40 = vmatpush.msra.mxu0 0.0
  %41 = vmatpush.msra.mxu0 0.0
  %42 = vmatpush.msra.mxu0 0.0
  %43 = vmatpush.msra.mxu0 %v26
  %44 = vmatmul.f32.gmra.mxu0 %v22
  %v45 = vpop.f32.mrf.mxu0
  %v46 = vadd.f32 %v19, %v45
  %47 = vdwg.mxu0
  %v48 = vmax.f32 %v46, 0.0
  %v49 = vld [vmem:[%s2] sm:$0xff]
  %v50 = vld [vmem:[%s2 + $0x8] sm:$0xff]
  %v51 = vld [vmem:[%s2 + $0x10] sm:$0xff]
  %v52 = vld [vmem:[%s2 + $0x18] sm:$0xff]
  %v53 = vld [vmem:[%s2 + $0x20] sm:$0xff]
  %v54 = vld [vmem:[%s2 + $0x28] sm:$0xff]
  %v55 = vld [vmem:[%s2 + $0x30] sm:$0xff]
  %v56 = vld [vmem:[%s2 + $0x38] sm:$0xff]
  %v57 = vld [vmem:[%s2 + $0x40] sm:$0xff]
  %v58 = vld [vmem:[%s2 + $0x48] sm:$0xff]
  %v59 = vld [vmem:[%s2 + $0x50] sm:$0xff]
  %v60 = vld [vmem:[%s2 + $0x58] sm:$0xff]
  %v61 = vld [vmem:[%s2 + $0x60] sm:$0xff]
  %v62 = vld [vmem:[%s2 + $0x68] sm:$0xff]
  %v63 = vld [vmem:[%s2 + $0x70] sm:$0xff]
  %v64 = vld [vmem:[%s2 + $0x78] sm:$0xff]
  %v65 = vld [vmem:[%s3] sm:$0x1]
  %v66 = vperm.slane %v65, 0
  %67 = vmatpush.msra.mxu0 %v64
  %68 = vmatpush.msra.mxu0 %v63
  %69 = vmatpush.msra.mxu0 %v62
  %70 = vmatpush.msra.mxu0 %v61
  %71 = vmatpush.msra.mxu0 %v60
  %72 = vmatpush.msra.mxu0 %v59
  %73 = vmatpush.msra.mxu0 %v58
  %74 = vmatpush.msra.mxu0 %v57
  %75 = vmatpush.msra.mxu0 %v56
  %76 = vmatpush.msra.mxu0 %v55
  %77 = vmatpush.msra.mxu0 %v54
  %78 = vmatpush.msra.mxu0 %v53
  %79 = vmatpush.msra.mxu0 %v52
  %80 = vmatpush.msra.mxu0 %v51
  %81 = vmatpush.msra.mxu0 %v50
  %82 = vmatpush.msra.mxu0 %v49
  %83 = vmatmul.f32.gmra.mxu0 %v48
  %v84 = vpop.f32.mrf.mxu0
  %v85 = vadd.f32 %v66, %v84
  %86 = vdwg.mxu0
  %v87 = vxor.u32 %v85, 2147483648
  %v88 = vmul.f32 %v87, 1.442695
  %v89 = vpow.pop %v88
  %v90 = vadd.f32 %v89, 1.0
  %v91 = vrcp.pop %v90
  %v92 = vmul.f32 %v90, %v91
  %v93 = vsub.f32 1.0, %v92
  %v94 = vmul.f32 %v91, %v93
  %v95 = vadd.f32 %v91, %v94
  %vm96 = vweird.f32 %v90
  %vm97 = vweird.f32 %v91
  %vm98 = vmor %vm96, %vm97
  %v99 = vsel %vm98, %v91, %v95
  %v100 = vand.u32 2147483647, %v90
  %vm101 = vcmp.eq.f32.partialorder %v100, 8.507059e+37
  %v102 = vand.u32 %v90, 2147483648
  %v103 = vor.u32 1.1754944e-38, %v102
  %v104 = vsel %vm101, %v103, %v99
  %v105 = vmul.f32 1.0, %v104
  %v106 = vsub.f32 1.0, %v105
  %108 = vrot.lane.b32.xlu0 %v106, 1
  %v109 = vpop.permute.xlu0 %108
  %v111 = vmul.f32 %v85, %v109
  %113 = vrot.lane.b32.xlu0 %v105, 2
  %v114 = vpop.permute.xlu0 %113
  %v116 = vmul.f32 %v85, %v114
  %118 = vrot.lane.b32.xlu0 %v116, 127
  %v119 = vpop.permute.xlu0 %118
  %v121 = vadd.f32 %v111, %v119
  %v122 = vmax.f32 %v85, 0.0
  %v123 = vld [vmem:[%s3 + $0x1] sm:$0x1]
  %v124 = vperm.slane %v123, 0
  %126 = vrot.lane.b32.xlu0 %v124, 1
  %v127 = vpop.permute.xlu0 %126
  %v129 = vmul.f32 %v122, %v127
  %v130 = vld [vmem:[%s3 + $0x2] sm:$0x1]
  %v131 = vperm.slane %v130, 0
  %133 = vrot.lane.b32.xlu0 %v131, 1
  %v134 = vpop.permute.xlu0 %133
  %v136 = vadd.f32 %v129, %v134
  %v137 = vmax.f32 %v136, 0.0
  %vm138 = vcmp.ne.f32.partialorder %v136, %v136
  %v139 = vadd.f32 %v136, 0.0
  %v140 = vand.u32 2147483647, %v136
  %v141 = vsub.f32 0.0, %v140
  %v142 = vmul.f32 %v141, 1.442695
  %v143 = vpow.pop %v142
  %v144 = vadd.f32 %v143, 1.0
  %v145 = vlog2.pop %v144
  %v146 = vmul.f32 %v145, 0.6931472
  %v147 = vmul.f32 -0.5, %v143
  %v148 = vadd.f32 %v147, 1.0
  %v149 = vmul.f32 %v148, %v143
  %v150 = vand.u32 2147483647, %v143
  %vm151 = vcmp.lt.f32.partialorder %v150, 0.0004427343
  %v152 = vsel %vm151, %v149, %v146
  %v153 = vadd.f32 %v137, %v152
  %v154 = vsel %vm138, %v139, %v153
  %v155 = vmul.f32 %v154, %v109
  %v156 = vmul.f32 %v154, %v114
  %158 = vrot.lane.b32.xlu0 %v156, 127
  %v159 = vpop.permute.xlu0 %158
  %v161 = vadd.f32 %v155, %v159
  %163 = vrot.lane.b32.xlu0 %v121, 127
  %v164 = vpop.permute.xlu0 %163
  %vm166 = vcmask 7168
  %v167 = vsel %vm166, %v164, %v161
  %vm168 = vcmask 15360
  %169 = vst.msk [vmem:[%s4] sm:$0xff] %vm168, %v167
  // Predicated region
  $region18: #{tpu_custom_call.1} parent=0 // pred_check
    _
  $region19: #{tpu_custom_call.1} parent=0 // pred_check_branch
    %171 = sbr.rel (0) target = $region21
  $region20: #{tpu_custom_call.1} parent=0 // pred_region
    _
  $region21: #{tpu_custom_call.1} parent=0 // pred_fallthru
    _
  // Predicated region
  $region22: #{tpu_custom_call.1} parent=0 // pred_check
    _
  $region23: #{tpu_custom_call.1} parent=0 // pred_check_branch
    %173 = sbr.rel (0) target = $region25
  $region24: #{tpu_custom_call.1} parent=0 // pred_region
    _
  $region25: #{tpu_custom_call.1} parent=0 // pred_fallthru
    _

</llo_original>
